<compile_context>
chip_gen: v5e
topology: v5e:2x2
jax: 0.10.0
libtpu: 0.0.40
codegen_flags: <defaults>
</compile_context>

<pallas_src>
import numpy as np
import jax
import jax.numpy as jnp
from jax.experimental import pallas as pl
from jax.experimental.pallas import tpu as pltpu


# ----------------------------- Pallas kernel --------------------------------

def hadamard_expansion_kernel(idx_i_ref, idx_j_ref, x_ref, scale_ref, bias_ref, o_ref):
    # idx_i_ref, idx_j_ref : SMEM (ce,) int32   channel indices of selected pairs
    # x_ref                : VMEM (c1, lane_tile)
    # scale_ref, bias_ref  : VMEM (c1+ce, 1)    folded inference BatchNorm
    # o_ref                : VMEM (c1+ce, lane_tile)
    c1 = x_ref.shape[0]
    ce = idx_i_ref.shape[0]

    x = x_ref[...]                                                    # (c1, lane_tile)

    # Passthrough half: BN on the original channels, stored directly (no concat temp).
    o_ref[0:c1, :] = (x * scale_ref[0:c1, :] + bias_ref[0:c1, :]).astype(o_ref.dtype)

    # Expansion half: gather the selected channel pairs with dynamic row slices
    # (unrolled; ce is small and static), Hadamard product, then one contiguous store.
    rows = []
    for e in range(ce):
        xi = x_ref[pl.ds(idx_i_ref[e], 1), :]                         # (1, lane_tile)
        xj = x_ref[pl.ds(idx_j_ref[e], 1), :]
        rows.append(xi * xj)
    x_expand = jnp.concatenate(rows, axis=0)                          # (ce, lane_tile)

    o_ref[c1:, :] = (x_expand * scale_ref[c1:, :] + bias_ref[c1:, :]).astype(o_ref.dtype)


def hadamard_expansion(x_nchw, idx_i, idx_j, bn_scale, bn_bias, *, max_lane_tile=2048):
    """x_nchw: (B, c1, H, W) f32; idx_i/idx_j: (ce,) int32; bn_*: (c1+ce,) f32."""
    B, c1, H, W = x_nchw.shape
    ce = int(idx_i.shape[0])
    C2 = c1 + ce
    HW = H * W
    L = B * HW

    # Channels -> sublanes, batch*spatial -> lanes (layout plumbing, not compute).
    x2 = x_nchw.reshape(B, c1, HW).transpose(1, 0, 2).reshape(c1, L)

    # Lane-dense tiling: pad lanes to a multiple of 128 and pick the largest tile
    # (<= max_lane_tile) that still leaves >= 2 grid steps (keeps both v7x TCs busy).
    n128 = -(-L // 128)
    if n128 <= 1:
        lane_tile = 128 * max(n128, 1)
    else:
        lane_tile = min(max_lane_tile, 128 * (-(-n128 // 2)))
    n_tiles = -(-(128 * n128) // lane_tile)
    L_pad = n_tiles * lane_tile
    if L_pad != L:
        x2 = jnp.pad(x2, ((0, 0), (0, L_pad - L)))

    scale2 = bn_scale.reshape(C2, 1).astype(jnp.float32)
    bias2 = bn_bias.reshape(C2, 1).astype(jnp.float32)

    out2 = pl.pallas_call(
        hadamard_expansion_kernel,
        out_shape=jax.ShapeDtypeStruct((C2, L_pad), x2.dtype),
        grid_spec=pltpu.PrefetchScalarGridSpec(
            num_scalar_prefetch=2,                      # idx_i, idx_j -> SMEM
            grid=(n_tiles,),
            in_specs=[
                pl.BlockSpec((c1, lane_tile), lambda l, ii, jj: (0, l)),
                pl.BlockSpec((C2, 1), lambda l, ii, jj: (0, 0)),
                pl.BlockSpec((C2, 1), lambda l, ii, jj: (0, 0)),
            ],
            out_specs=pl.BlockSpec((C2, lane_tile), lambda l, ii, jj: (0, l)),
        ),
        # Per-step VMEM footprint is tiny (< 1 MiB double-buffered), so the default
        # scoped VMEM limit is fine on v5e/v6e/v7x; no vmem_limit_bytes override needed.
        compiler_params=pltpu.CompilerParams(
            dimension_semantics=("parallel",)),
    )(idx_i.astype(jnp.int32), idx_j.astype(jnp.int32), x2, scale2, bias2)

    out = out2[:, :L].reshape(C2, B, HW).transpose(1, 0, 2).reshape(B, C2, H, W)
    return out


# ------------------------- Parameter / mask setup ----------------------------

def build_params(c1, ce, key):
    """Deterministically build the selected channel-pair indices, the one-hot
    selection matrices (for the reference), and folded BN scale/bias."""
    candidates_num = c1 * (c1 - 1) // 2
    assert ce <= candidates_num, "too much expansion channels required"

    # Candidate pairs (i, j), i < j, and their one-hot picker matrices.
    # NOTE: the original `can_idx = i*c1 + (j-i-1)` formula overflows candidates_num
    # for c1 >= 3; we enumerate the upper-triangular pairs sequentially (the intent).
    pair_i = np.zeros((candidates_num,), np.int32)
    pair_j = np.zeros((candidates_num,), np.int32)
    cand = np.zeros((2, candidates_num, c1), np.float32)
    k = 0
    for i in range(c1):
        for j in range(i + 1, c1):
            pair_i[k] = i
            pair_j[k] = j
            cand[0, k, i] = 1.0
            cand[1, k, j] = 1.0
            k += 1

    # logits ~ randn(candidates_num), tau = 2.0
    logits = jax.random.normal(key, (candidates_num,), dtype=jnp.float32)
    tau = 2.0
    # TODO(synk): _update_mask uses gumbel_softmax sampling (training-only); eval-mode
    # forward here uses the deterministic softmax(logits / tau) top-k selection.
    mask = jax.nn.softmax(logits / tau)
    _, topk_idx = jax.lax.top_k(mask, ce)
    topk_idx = jnp.sort(topk_idx)  # boolean selection in torch keeps candidate order

    idx_i = jnp.asarray(pair_i)[topk_idx]                  # (ce,) channel index i
    idx_j = jnp.asarray(pair_j)[topk_idx]                  # (ce,) channel index j
    selected_met = jnp.asarray(cand)[:, topk_idx, :]       # (2, ce, c1) one-hot rows

    # BatchNorm2d(c1+ce) at init, eval mode: gamma=1, beta=0, mean=0, var=1, eps=1e-5
    C2 = c1 + ce
    gamma = jnp.ones((C2,), jnp.float32)
    beta = jnp.zeros((C2,), jnp.float32)
    running_mean = jnp.zeros((C2,), jnp.float32)
    running_var = jnp.ones((C2,), jnp.float32)
    eps = 1e-5
    bn_scale = gamma / jnp.sqrt(running_var + eps)
    bn_bias = beta - running_mean * bn_scale
    return idx_i, idx_j, selected_met, bn_scale, bn_bias


def reference_forward(x_nchw, selected_met, bn_scale, bn_bias):
    """Pure-JAX reference of the eval-mode forward (for correctness check)."""
    x_i = jnp.einsum("ec,bchw->behw", selected_met[0], x_nchw)
    x_j = jnp.einsum("ec,bchw->behw", selected_met[1], x_nchw)
    cat = jnp.concatenate([x_nchw, x_i * x_j], axis=1)
    return cat * bn_scale[None, :, None, None] + bn_bias[None, :, None, None]


# ------------------------------------ main ------------------------------------

if __name__ == "__main__":
    B, c1, H, W = 2, 8, 16, 16
    ce = 8  # <= c1*(c1-1)//2 = 28

    key = jax.random.PRNGKey(0)
    k_x, k_logits = jax.random.split(key)

    x = jax.random.normal(k_x, (B, c1, H, W), dtype=jnp.float32)
    idx_i, idx_j, selected_met, bn_scale, bn_bias = build_params(c1, ce, k_logits)

    out = hadamard_expansion(x, idx_i, idx_j, bn_scale, bn_bias)
    out = jax.block_until_ready(out)

    ref = reference_forward(x, selected_met, bn_scale, bn_bias)
    assert out.shape == (B, c1 + ce, H, W), out.shape
    np.testing.assert_allclose(np.asarray(out), np.asarray(ref), rtol=1e-5, atol=1e-5)

    print("KERNEL_OK")
</pallas_src>

<mosaic_0001>
module attributes {stable_mosaic.version = 11 : i64} {
  func.func @hadamard_expansion_kernel(%arg0: i32, %arg1: memref<8xi32, #tpu.memory_space<smem>>, %arg2: memref<8xi32, #tpu.memory_space<smem>>, %arg3: memref<8x256xf32, #tpu.memory_space<vmem>>, %arg4: memref<16x1xf32, #tpu.memory_space<vmem>>, %arg5: memref<16x1xf32, #tpu.memory_space<vmem>>, %arg6: memref<16x256xf32, #tpu.memory_space<vmem>>) attributes {dimension_semantics = [#tpu.dimension_semantics<parallel>], iteration_bounds = array<i64: 2>, scalar_prefetch = 2 : i64, scratch_operands = 0 : i64, tpu.core_type = #tpu.core_type<tc>, window_params = [{transform_indices = @transform_0, window_bounds = array<i64: 8, 256>}, {pipeline_mode = #tpu.pipeline_mode<synchronous>, transform_indices = @transform_1, window_bounds = array<i64: 16, 1>}, {pipeline_mode = #tpu.pipeline_mode<synchronous>, transform_indices = @transform_2, window_bounds = array<i64: 16, 1>}, {transform_indices = @transform_3, window_bounds = array<i64: 16, 256>}]} {
    %c0 = arith.constant 0 : index
    %c0_0 = arith.constant 0 : index
    %0 = vector.load %arg3[%c0, %c0_0] : memref<8x256xf32, #tpu.memory_space<vmem>>, vector<8x256xf32>
    %c0_1 = arith.constant 0 : index
    %c0_2 = arith.constant 0 : index
    %1 = vector.load %arg4[%c0_1, %c0_2] : memref<16x1xf32, #tpu.memory_space<vmem>>, vector<8x1xf32>
    %2 = vector.broadcast %1 : vector<8x1xf32> to vector<8x256xf32>
    %3 = arith.mulf %0, %2 : vector<8x256xf32>
    %c0_3 = arith.constant 0 : index
    %c0_4 = arith.constant 0 : index
    %4 = vector.load %arg5[%c0_3, %c0_4] : memref<16x1xf32, #tpu.memory_space<vmem>>, vector<8x1xf32>
    %5 = vector.broadcast %4 : vector<8x1xf32> to vector<8x256xf32>
    %6 = arith.addf %3, %5 : vector<8x256xf32>
    %c0_5 = arith.constant 0 : index
    %c0_6 = arith.constant 0 : index
    %7 = vector.load %arg6[%c0_5, %c0_6] : memref<16x256xf32, #tpu.memory_space<vmem>>, vector<8x256xf32>
    tpu.vector_store %arg6[%c0_5, %c0_6], %6 {strides = array<i32>} : memref<16x256xf32, #tpu.memory_space<vmem>>, vector<8x256xf32>,
    %c0_7 = arith.constant 0 : index
    %8 = memref.load %arg1[%c0_7] : memref<8xi32, #tpu.memory_space<smem>>
    %9 = arith.index_cast %8 : i32 to index
    %c0_8 = arith.constant 0 : index
    %10 = vector.load %arg3[%9, %c0_8] : memref<8x256xf32, #tpu.memory_space<vmem>>, vector<1x256xf32>
    %c0_9 = arith.constant 0 : index
    %11 = memref.load %arg2[%c0_9] : memref<8xi32, #tpu.memory_space<smem>>
    %12 = arith.index_cast %11 : i32 to index
    %c0_10 = arith.constant 0 : index
    %13 = vector.load %arg3[%12, %c0_10] : memref<8x256xf32, #tpu.memory_space<vmem>>, vector<1x256xf32>
    %14 = arith.mulf %10, %13 : vector<1x256xf32>
    %c1 = arith.constant 1 : index
    %15 = memref.load %arg1[%c1] : memref<8xi32, #tpu.memory_space<smem>>
    %16 = arith.index_cast %15 : i32 to index
    %c0_11 = arith.constant 0 : index
    %17 = vector.load %arg3[%16, %c0_11] : memref<8x256xf32, #tpu.memory_space<vmem>>, vector<1x256xf32>
    %c1_12 = arith.constant 1 : index
    %18 = memref.load %arg2[%c1_12] : memref<8xi32, #tpu.memory_space<smem>>
    %19 = arith.index_cast %18 : i32 to index
    %c0_13 = arith.constant 0 : index
    %20 = vector.load %arg3[%19, %c0_13] : memref<8x256xf32, #tpu.memory_space<vmem>>, vector<1x256xf32>
    %21 = arith.mulf %17, %20 : vector<1x256xf32>
    %c2 = arith.constant 2 : index
    %22 = memref.load %arg1[%c2] : memref<8xi32, #tpu.memory_space<smem>>
    %23 = arith.index_cast %22 : i32 to index
    %c0_14 = arith.constant 0 : index
    %24 = vector.load %arg3[%23, %c0_14] : memref<8x256xf32, #tpu.memory_space<vmem>>, vector<1x256xf32>
    %c2_15 = arith.constant 2 : index
    %25 = memref.load %arg2[%c2_15] : memref<8xi32, #tpu.memory_space<smem>>
    %26 = arith.index_cast %25 : i32 to index
    %c0_16 = arith.constant 0 : index
    %27 = vector.load %arg3[%26, %c0_16] : memref<8x256xf32, #tpu.memory_space<vmem>>, vector<1x256xf32>
    %28 = arith.mulf %24, %27 : vector<1x256xf32>
    %c3 = arith.constant 3 : index
    %29 = memref.load %arg1[%c3] : memref<8xi32, #tpu.memory_space<smem>>
    %30 = arith.index_cast %29 : i32 to index
    %c0_17 = arith.constant 0 : index
    %31 = vector.load %arg3[%30, %c0_17] : memref<8x256xf32, #tpu.memory_space<vmem>>, vector<1x256xf32>
    %c3_18 = arith.constant 3 : index
    %32 = memref.load %arg2[%c3_18] : memref<8xi32, #tpu.memory_space<smem>>
    %33 = arith.index_cast %32 : i32 to index
    %c0_19 = arith.constant 0 : index
    %34 = vector.load %arg3[%33, %c0_19] : memref<8x256xf32, #tpu.memory_space<vmem>>, vector<1x256xf32>
    %35 = arith.mulf %31, %34 : vector<1x256xf32>
    %c4 = arith.constant 4 : index
    %36 = memref.load %arg1[%c4] : memref<8xi32, #tpu.memory_space<smem>>
    %37 = arith.index_cast %36 : i32 to index
    %c0_20 = arith.constant 0 : index
    %38 = vector.load %arg3[%37, %c0_20] : memref<8x256xf32, #tpu.memory_space<vmem>>, vector<1x256xf32>
    %c4_21 = arith.constant 4 : index
    %39 = memref.load %arg2[%c4_21] : memref<8xi32, #tpu.memory_space<smem>>
    %40 = arith.index_cast %39 : i32 to index
    %c0_22 = arith.constant 0 : index
    %41 = vector.load %arg3[%40, %c0_22] : memref<8x256xf32, #tpu.memory_space<vmem>>, vector<1x256xf32>
    %42 = arith.mulf %38, %41 : vector<1x256xf32>
    %c5 = arith.constant 5 : index
    %43 = memref.load %arg1[%c5] : memref<8xi32, #tpu.memory_space<smem>>
    %44 = arith.index_cast %43 : i32 to index
    %c0_23 = arith.constant 0 : index
    %45 = vector.load %arg3[%44, %c0_23] : memref<8x256xf32, #tpu.memory_space<vmem>>, vector<1x256xf32>
    %c5_24 = arith.constant 5 : index
    %46 = memref.load %arg2[%c5_24] : memref<8xi32, #tpu.memory_space<smem>>
    %47 = arith.index_cast %46 : i32 to index
    %c0_25 = arith.constant 0 : index
    %48 = vector.load %arg3[%47, %c0_25] : memref<8x256xf32, #tpu.memory_space<vmem>>, vector<1x256xf32>
    %49 = arith.mulf %45, %48 : vector<1x256xf32>
    %c6 = arith.constant 6 : index
    %50 = memref.load %arg1[%c6] : memref<8xi32, #tpu.memory_space<smem>>
    %51 = arith.index_cast %50 : i32 to index
    %c0_26 = arith.constant 0 : index
    %52 = vector.load %arg3[%51, %c0_26] : memref<8x256xf32, #tpu.memory_space<vmem>>, vector<1x256xf32>
    %c6_27 = arith.constant 6 : index
    %53 = memref.load %arg2[%c6_27] : memref<8xi32, #tpu.memory_space<smem>>
    %54 = arith.index_cast %53 : i32 to index
    %c0_28 = arith.constant 0 : index
    %55 = vector.load %arg3[%54, %c0_28] : memref<8x256xf32, #tpu.memory_space<vmem>>, vector<1x256xf32>
    %56 = arith.mulf %52, %55 : vector<1x256xf32>
    %c7 = arith.constant 7 : index
    %57 = memref.load %arg1[%c7] : memref<8xi32, #tpu.memory_space<smem>>
    %58 = arith.index_cast %57 : i32 to index
    %c0_29 = arith.constant 0 : index
    %59 = vector.load %arg3[%58, %c0_29] : memref<8x256xf32, #tpu.memory_space<vmem>>, vector<1x256xf32>
    %c7_30 = arith.constant 7 : index
    %60 = memref.load %arg2[%c7_30] : memref<8xi32, #tpu.memory_space<smem>>
    %61 = arith.index_cast %60 : i32 to index
    %c0_31 = arith.constant 0 : index
    %62 = vector.load %arg3[%61, %c0_31] : memref<8x256xf32, #tpu.memory_space<vmem>>, vector<1x256xf32>
    %63 = arith.mulf %59, %62 : vector<1x256xf32>
    %64 = tpu.concatenate %14, %21, %28, %35, %42, %49, %56, %63 in 0 : vector<1x256xf32>, vector<1x256xf32>, vector<1x256xf32>, vector<1x256xf32>, vector<1x256xf32>, vector<1x256xf32>, vector<1x256xf32>, vector<1x256xf32> -> vector<8x256xf32>
    %c8 = arith.constant 8 : index
    %c0_32 = arith.constant 0 : index
    %65 = vector.load %arg4[%c8, %c0_32] : memref<16x1xf32, #tpu.memory_space<vmem>>, vector<8x1xf32>
    %66 = vector.broadcast %65 : vector<8x1xf32> to vector<8x256xf32>
    %67 = arith.mulf %64, %66 : vector<8x256xf32>
    %c8_33 = arith.constant 8 : index
    %c0_34 = arith.constant 0 : index
    %68 = vector.load %arg5[%c8_33, %c0_34] : memref<16x1xf32, #tpu.memory_space<vmem>>, vector<8x1xf32>
    %69 = vector.broadcast %68 : vector<8x1xf32> to vector<8x256xf32>
    %70 = arith.addf %67, %69 : vector<8x256xf32>
    %c8_35 = arith.constant 8 : index
    %c0_36 = arith.constant 0 : index
    %71 = vector.load %arg6[%c8_35, %c0_36] : memref<16x256xf32, #tpu.memory_space<vmem>>, vector<8x256xf32>
    tpu.vector_store %arg6[%c8_35, %c0_36], %70 {strides = array<i32>} : memref<16x256xf32, #tpu.memory_space<vmem>>, vector<8x256xf32>,
    return
  }
  func.func @transform_0(%arg0: i32, %arg1: memref<8xi32, #tpu.memory_space<smem>>, %arg2: memref<8xi32, #tpu.memory_space<smem>>) -> (i32, i32) {
    %c0_i32 = arith.constant 0 : i32
    %c0_i32_0 = arith.constant 0 : i32
    return %c0_i32, %arg0 : i32, i32
  }
  func.func @transform_1(%arg0: i32, %arg1: memref<8xi32, #tpu.memory_space<smem>>, %arg2: memref<8xi32, #tpu.memory_space<smem>>) -> (i32, i32) {
    %c0_i32 = arith.constant 0 : i32
    %c0_i32_0 = arith.constant 0 : i32
    %c0_i32_1 = arith.constant 0 : i32
    return %c0_i32, %c0_i32_0 : i32, i32
  }
  func.func @transform_2(%arg0: i32, %arg1: memref<8xi32, #tpu.memory_space<smem>>, %arg2: memref<8xi32, #tpu.memory_space<smem>>) -> (i32, i32) {
    %c0_i32 = arith.constant 0 : i32
    %c0_i32_0 = arith.constant 0 : i32
    %c0_i32_1 = arith.constant 0 : i32
    return %c0_i32, %c0_i32_0 : i32, i32
  }
  func.func @transform_3(%arg0: i32, %arg1: memref<8xi32, #tpu.memory_space<smem>>, %arg2: memref<8xi32, #tpu.memory_space<smem>>) -> (i32, i32) {
    %c0_i32 = arith.constant 0 : i32
    %c0_i32_0 = arith.constant 0 : i32
    return %c0_i32, %arg0 : i32, i32
  }
}

</mosaic_0001>

<llo_original>
// kernel: tpu_custom_call.1
$region0: #{tpu_custom_call.1}
  #allocation0 [shape = 'u32[]', space=smem, size = 0x4, offset = 0x4, fixed_abs, tag = 'smem constant byte address 0x4 - core index']
  #allocation1 [shape = 'u32[72,128]{1,0:T(1,128)}', space=vmem, size = 0x9000, scoped, tag = 'internal scratch']
  #allocation2 [shape = 's32[1]{0}', space=sflag, size = 0x4, scoped, tag = 'scoped memory for tpu_custom_call.1']
  #allocation3 [shape = 'u8[512]{0}', space=smem, size = 0x200, scoped, tag = 'prefetched SMEM operand 0']
  #allocation4 [shape = 'u8[512]{0}', space=smem, size = 0x200, scoped, tag = 'prefetched SMEM operand 1']
  %s0 = inlined_call_operand.vmem [shape: s32[8], index: 0, kind: input, shape index: {}]
  %s1 = inlined_call_operand.hbm [shape: s32[8], index: 1, kind: input, shape index: {}]
  %s2 = inlined_call_operand.vmem [shape: f32[8,512], index: 2, kind: input, shape index: {}]
  %s3 = inlined_call_operand.vmem [shape: f32[16,1], index: 3, kind: input, shape index: {}]
  %s4 = inlined_call_operand.vmem [shape: f32[16,1], index: 4, kind: input, shape index: {}]
  %s5 = inlined_call_operand.hbm [shape: f32[16,512], index: 5, kind: output, shape index: {}]
  %s6 = sld [smem:[#allocation0]]
  $region45: #{tpu_custom_call.1} parent=0
    _
  %s8 = ssub.s32 1, %s6
  %s9 = scalar_select 0, %s8, %s6
  %s11 = sshll.u32 %s0, 4
  %s12 = int_to_ptr.vmem [resolvable:$true] %s11
  %14 = dma.vmem_to_smem %s12, 16, [#allocation3], [#allocation2]
  %s16 = sshll.u32 %s1, 4
  %s17 = int_to_ptr.hbm [resolvable:$true] %s16
  %19 = dma.hbm_to_smem %s17, 16, [#allocation4], [#allocation2]
  %21 = dma.done [#allocation2], 32
  %22 = sfence
  $region1: #{tpu_custom_call.1} parent=0
    #allocation5 [shape = 'u8[32768]{0}', space=vmem, size = 0x8000, scoped, tag = 'output window, operand 0']
    #allocation6 [shape = 's32[2]{0}', space=sflag, size = 0x8, scoped, tag = 'scoped memory for tpu_custom_call.1']
    %23 = vsyncpa [#allocation6], 0
    %s24 = scalar_lea.sflag [#allocation6], 1
    %25 = vsyncpa %s24, 0
    loop: start=0, step=1, limit=4
    $region2: #{tpu_custom_call.1} parent=1 // loop_pre_header
      _
    $region3: #{tpu_custom_call.1} parent=1 // loop_header
      %s27 = sphi 0, %s31
      %p28 = scmp.ge.s32.totalorder %s27, 4
      %s37 = sphi 0, %s39
      %s40 = sphi 0, %s37
      %s41 = sphi 0, %s40
      %s57 = sphi 0, %s41
      %s61 = sphi 0, %s61
      %s63 = sphi 0, %s61
      %s64 = sphi 0, %s63
      %s78 = sphi 0, %s64
      %s82 = sphi 0, %s82
      %s84 = sphi 0, %s82
      %s85 = sphi 0, %s84
      %s99 = sphi 0, %s85
      %s105 = sphi 0, %s107
      %s108 = sphi 0, %s105
      %s109 = sphi 0, %s108
      %s125 = sphi 0, %s109
    $region4: #{tpu_custom_call.1} parent=1 // loop_header_branch
      %30 = sbr.rel (%p28) target = $region8
    $region5: #{tpu_custom_call.1} parent=1 // loop_body
      %s32 = ssub.s32 %s27, 1
      %s33 = ssub.s32 %s27, 2
      %s34 = sadd.s32 %s27, 1
      %s35 = ssub.s32 %s27, %s34
      %p36 = scmp.eq.s32.totalorder %s35, 0
      %s38 = sadd.s32 %s37, 1
      %s39 = scalar_select %p36, %s37, %s38
      %p42 = pneg %p36
      %p43 = scmp.eq.s32.totalorder %s27, 1
      %p44 = por %p42, %p43
      %p45 = scmp.ne.s32.totalorder %s37, %s40
      %p46 = scmp.eq.s32.totalorder %s27, 0
      %p47 = por %p45, %p46
      %p48 = scmp.ne.s32.totalorder %s37, %s40
      %p49 = scmp.eq.s32.totalorder %s32, 1
      %p50 = por %p48, %p49
      %p51 = scmp.ne.s32.totalorder %s40, %s41
      %p52 = scmp.eq.s32.totalorder %s32, 0
      %p53 = por %p51, %p52
      %p54 = scmp.ne.s32.totalorder %s40, %s41
      %p55 = scmp.eq.s32.totalorder %s33, 1
      %p56 = por %p54, %p55
      %p58 = scmp.ne.s32.totalorder %s41, %s57
      %p59 = scmp.eq.s32.totalorder %s33, 0
      %p60 = por %p58, %p59
      %s62 = sadd.s32 %s61, 1
      %p65 = scmp.eq.s32.totalorder %s27, 1
      %p66 = scmp.ne.s32.totalorder %s61, %s63
      %p67 = scmp.eq.s32.totalorder %s27, 0
      %p68 = por %p66, %p67
      %p69 = scmp.ne.s32.totalorder %s61, %s63
      %p70 = scmp.eq.s32.totalorder %s32, 1
      %p71 = por %p69, %p70
      %p72 = scmp.ne.s32.totalorder %s63, %s64
      %p73 = scmp.eq.s32.totalorder %s32, 0
      %p74 = por %p72, %p73
      %p75 = scmp.ne.s32.totalorder %s63, %s64
      %p76 = scmp.eq.s32.totalorder %s33, 1
      %p77 = por %p75, %p76
      %p79 = scmp.ne.s32.totalorder %s64, %s78
      %p80 = scmp.eq.s32.totalorder %s33, 0
      %p81 = por %p79, %p80
      %s83 = sadd.s32 %s82, 1
      %p86 = scmp.eq.s32.totalorder %s27, 1
      %p87 = scmp.ne.s32.totalorder %s82, %s84
      %p88 = scmp.eq.s32.totalorder %s27, 0
      %p89 = por %p87, %p88
      %p90 = scmp.ne.s32.totalorder %s82, %s84
      %p91 = scmp.eq.s32.totalorder %s32, 1
      %p92 = por %p90, %p91
      %p93 = scmp.ne.s32.totalorder %s84, %s85
      %p94 = scmp.eq.s32.totalorder %s32, 0
      %p95 = por %p93, %p94
      %p96 = scmp.ne.s32.totalorder %s84, %s85
      %p97 = scmp.eq.s32.totalorder %s33, 1
      %p98 = por %p96, %p97
      %p100 = scmp.ne.s32.totalorder %s85, %s99
      %p101 = scmp.eq.s32.totalorder %s33, 0
      %p102 = por %p100, %p101
      %s103 = ssub.s32 %s27, %s34
      %p104 = scmp.eq.s32.totalorder %s103, 0
      %s106 = sadd.s32 %s105, 1
      %s107 = scalar_select %p104, %s105, %s106
      %p110 = pneg %p104
      %p111 = scmp.eq.s32.totalorder %s27, 1
      %p112 = por %p110, %p111
      %p113 = scmp.ne.s32.totalorder %s105, %s108
      %p114 = scmp.eq.s32.totalorder %s27, 0
      %p115 = por %p113, %p114
      %p116 = scmp.ne.s32.totalorder %s105, %s108
      %p117 = scmp.eq.s32.totalorder %s32, 1
      %p118 = por %p116, %p117
      %p119 = scmp.ne.s32.totalorder %s108, %s109
      %p120 = scmp.eq.s32.totalorder %s32, 0
      %p121 = por %p119, %p120
      %p122 = scmp.ne.s32.totalorder %s108, %s109
      %p123 = scmp.eq.s32.totalorder %s33, 1
      %p124 = por %p122, %p123
      %p126 = scmp.ne.s32.totalorder %s109, %s125
      %p127 = scmp.eq.s32.totalorder %s33, 0
      %p128 = por %p126, %p127
      %p129 = scmp.le.s32.totalorder 1, %s27
      %p130 = scmp.lt.s32.totalorder %s27, 3
      %p131 = pnand %p129, %p130
      %p132 = pneg %p131
      // Predicated region
      $region9: #{tpu_custom_call.1} parent=5 // pred_check
        _
      $region10: #{tpu_custom_call.1} parent=5 // pred_check_branch
        %134 = sbr.rel (%p131) target = $region12
      $region11: #{tpu_custom_call.1} parent=5 // pred_region
        %s135 = ssub.s32 %s27, 1
        // Predicated region
        $region13: #{tpu_custom_call.1} parent=11 // pred_check
          %p136 = pneg %p74
        $region14: #{tpu_custom_call.1} parent=11 // pred_check_branch
          %138 = sbr.rel (%p136) target = $region16
        $region15: #{tpu_custom_call.1} parent=11 // pred_region
          _
        $region16: #{tpu_custom_call.1} parent=11 // pred_fallthru
          _
        // Predicated region
        $region17: #{tpu_custom_call.1} parent=11 // pred_check
          %p139 = pneg %p95
        $region18: #{tpu_custom_call.1} parent=11 // pred_check_branch
          %141 = sbr.rel (%p139) target = $region20
        $region19: #{tpu_custom_call.1} parent=11 // pred_region
          _
        $region20: #{tpu_custom_call.1} parent=11 // pred_fallthru
          _
      $region12: #{tpu_custom_call.1} parent=5 // pred_fallthru
        _
      %p142 = scmp.lt.s32.totalorder %s27, 2
      // Predicated region
      $region21: #{tpu_custom_call.1} parent=5 // pred_check
        %p143 = pneg %p142
      $region22: #{tpu_custom_call.1} parent=5 // pred_check_branch
        %145 = sbr.rel (%p143) target = $region24
      $region23: #{tpu_custom_call.1} parent=5 // pred_region
        // Predicated region
        $region25: #{tpu_custom_call.1} parent=23 // pred_check
          %p146 = pneg %p47
        $region26: #{tpu_custom_call.1} parent=23 // pred_check_branch
          %148 = sbr.rel (%p146) target = $region28
        $region27: #{tpu_custom_call.1} parent=23 // pred_region
          %s149 = smul.u32 2, %s27
          %p150 = scmp.lt.s32.totalorder %s149, 3
          %s151 = scalar_select %p150, %s149, 3
          %s152 = smul.addr %s151, 8
          %s153 = scalar_lea.vmem %s2, %s152
          %s154 = smul.u32 2, %s27
        $region28: #{tpu_custom_call.1} parent=23 // pred_fallthru
          _
      $region24: #{tpu_custom_call.1} parent=5 // pred_fallthru
        _
      %p155 = scmp.le.s32.totalorder 1, %s27
      %p156 = scmp.lt.s32.totalorder %s27, 3
      %p157 = pnand %p155, %p156
      %p158 = pneg %p157
      // Predicated region
      $region29: #{tpu_custom_call.1} parent=5 // pred_check
        _
      $region30: #{tpu_custom_call.1} parent=5 // pred_check_branch
        %160 = sbr.rel (%p157) target = $region32
      $region31: #{tpu_custom_call.1} parent=5 // pred_region
        %s161 = ssub.s32 %s27, 1
        %s162 = smul.u32 2, %s32
        %p163 = scmp.lt.s32.totalorder %s162, 3
        %s164 = scalar_select %p163, %s162, 3
        %s165 = smul.addr %s164, 8
        %s166 = scalar_lea.vmem %s2, %s165
        %p167 = pneg %p53
        %p168 = pneg %p50
        %p169 = pneg %p74
        %p170 = pneg %p71
        %p171 = pneg %p95
        %p172 = pneg %p92
        %p173 = pneg %p121
        %p174 = pneg %p118
        %s175 = sand.u32 %s108, 1
        %s176 = scalar_lea.sflag [#allocation6], %s175
        %s177 = sand.u32 %s108, 1
        %s178 = smul.addr %s177, 32
        %s179 = scalar_lea.vmem [#allocation5], %s178
        %s180 = smul.u32 2, %s32
        %p181 = scmp.lt.s32.totalorder %s180, 3
        %s182 = scalar_select %p181, %s180, 3
        %s183 = smul.addr %s182, 8
        %s184 = scalar_lea.vmem %s2, %s183
        %s185 = smul.u32 2, %s32
        %s186 = smul.u32 2, %s32
        %v187 = vld [vmem:[%s184] sm:$0xff]
        %v188 = vld [vmem:[%s184 + $0x8] sm:$0xff]
        %v189 = vld [vmem:[%s3] sm:$0xff]
        %191 = vset.pattern.permute.xlu0 0
        %192 = vperm.xlu0 %191, %v189
        %v193 = vpop.permute.xlu0 %192
        %v195 = vmul.f32 %v187, %v193
        %v196 = vmul.f32 %v188, %v193
        %v197 = vld [vmem:[%s4] sm:$0xff]
        %199 = vset.pattern.permute.xlu0 0
        %200 = vperm.xlu0 %199, %v197
        %v201 = vpop.permute.xlu0 %200
        %v203 = vadd.f32 %v195, %v201
        %v204 = vadd.f32 %v196, %v201
        %205 = vst [vmem:[%s179] sm:$0xff] %v203
        %206 = vst [vmem:[%s179 + $0x8] sm:$0xff] %v204
        %s207 = sld [smem:[#allocation3]]
        %s208 = sshra.s32 %s207, 3
        %s209 = sand.u32 %s207, 7
        %s210 = sshra.s32 %s207, 3
        %s211 = sand.u32 %s207, 7
        %s212 = smul.u32 %s208, 2
        %s213 = smul.u32 %s212, 8
        %s214 = sadd.s32 %s213, %s211
        %s215 = scalar_lea.vmem %s184, %s214
        %v216 = vld [vmem:[%s215] ss:$8 sm:$0x3]
        %s217 = sld [smem:[#allocation4]]
        %s218 = sshra.s32 %s217, 3
        %s219 = sand.u32 %s217, 7
        %s220 = sshra.s32 %s217, 3
        %s221 = sand.u32 %s217, 7
        %s222 = smul.u32 %s218, 2
        %s223 = smul.u32 %s222, 8
        %s224 = sadd.s32 %s223, %s221
        %s225 = scalar_lea.vmem %s184, %s224
        %v226 = vld [vmem:[%s225] ss:$8 sm:$0x3]
        %v227 = vmul.f32 %v216, %v226
        %s228 = sld [smem:[#allocation3 + $0x1]]
        %s229 = sshra.s32 %s228, 3
        %s230 = sand.u32 %s228, 7
        %s231 = sshra.s32 %s228, 3
        %s232 = sand.u32 %s228, 7
        %s233 = smul.u32 %s229, 2
        %s234 = smul.u32 %s233, 8
        %s235 = sadd.s32 %s234, %s232
        %s236 = scalar_lea.vmem %s184, %s235
        %v237 = vld [vmem:[%s236] ss:$8 sm:$0x3]
        %s238 = sld [smem:[#allocation4 + $0x1]]
        %s239 = sshra.s32 %s238, 3
        %s240 = sand.u32 %s238, 7
        %s241 = sshra.s32 %s238, 3
        %s242 = sand.u32 %s238, 7
        %s243 = smul.u32 %s239, 2
        %s244 = smul.u32 %s243, 8
        %s245 = sadd.s32 %s244, %s242
        %s246 = scalar_lea.vmem %s184, %s245
        %v247 = vld [vmem:[%s246] ss:$8 sm:$0x3]
        %v248 = vmul.f32 %v237, %v247
        %s249 = sld [smem:[#allocation3 + $0x2]]
        %s250 = sshra.s32 %s249, 3
        %s251 = sand.u32 %s249, 7
        %s252 = sshra.s32 %s249, 3
        %s253 = sand.u32 %s249, 7
        %s254 = smul.u32 %s250, 2
        %s255 = smul.u32 %s254, 8
        %s256 = sadd.s32 %s255, %s253
        %s257 = scalar_lea.vmem %s184, %s256
        %v258 = vld [vmem:[%s257] ss:$8 sm:$0x3]
        %s259 = sld [smem:[#allocation4 + $0x2]]
        %s260 = sshra.s32 %s259, 3
        %s261 = sand.u32 %s259, 7
        %s262 = sshra.s32 %s259, 3
        %s263 = sand.u32 %s259, 7
        %s264 = smul.u32 %s260, 2
        %s265 = smul.u32 %s264, 8
        %s266 = sadd.s32 %s265, %s263
        %s267 = scalar_lea.vmem %s184, %s266
        %v268 = vld [vmem:[%s267] ss:$8 sm:$0x3]
        %v269 = vmul.f32 %v258, %v268
        %s270 = sld [smem:[#allocation3 + $0x3]]
        %s271 = sshra.s32 %s270, 3
        %s272 = sand.u32 %s270, 7
        %s273 = sshra.s32 %s270, 3
        %s274 = sand.u32 %s270, 7
        %s275 = smul.u32 %s271, 2
        %s276 = smul.u32 %s275, 8
        %s277 = sadd.s32 %s276, %s274
        %s278 = scalar_lea.vmem %s184, %s277
        %v279 = vld [vmem:[%s278] ss:$8 sm:$0x3]
        %s280 = sld [smem:[#allocation4 + $0x3]]
        %s281 = sshra.s32 %s280, 3
        %s282 = sand.u32 %s280, 7
        %s283 = sshra.s32 %s280, 3
        %s284 = sand.u32 %s280, 7
        %s285 = smul.u32 %s281, 2
        %s286 = smul.u32 %s285, 8
        %s287 = sadd.s32 %s286, %s284
        %s288 = scalar_lea.vmem %s184, %s287
        %v289 = vld [vmem:[%s288] ss:$8 sm:$0x3]
        %v290 = vmul.f32 %v279, %v289
        %s291 = sld [smem:[#allocation3 + $0x4]]
        %s292 = sshra.s32 %s291, 3
        %s293 = sand.u32 %s291, 7
        %s294 = sshra.s32 %s291, 3
        %s295 = sand.u32 %s291, 7
        %s296 = smul.u32 %s292, 2
        %s297 = smul.u32 %s296, 8
        %s298 = sadd.s32 %s297, %s295
        %s299 = scalar_lea.vmem %s184, %s298
        %v300 = vld [vmem:[%s299] ss:$8 sm:$0x3]
        %s301 = sld [smem:[#allocation4 + $0x4]]
        %s302 = sshra.s32 %s301, 3
        %s303 = sand.u32 %s301, 7
        %s304 = sshra.s32 %s301, 3
        %s305 = sand.u32 %s301, 7
        %s306 = smul.u32 %s302, 2
        %s307 = smul.u32 %s306, 8
        %s308 = sadd.s32 %s307, %s305
        %s309 = scalar_lea.vmem %s184, %s308
        %v310 = vld [vmem:[%s309] ss:$8 sm:$0x3]
        %v311 = vmul.f32 %v300, %v310
        %s312 = sld [smem:[#allocation3 + $0x5]]
        %s313 = sshra.s32 %s312, 3
        %s314 = sand.u32 %s312, 7
        %s315 = sshra.s32 %s312, 3
        %s316 = sand.u32 %s312, 7
        %s317 = smul.u32 %s313, 2
        %s318 = smul.u32 %s317, 8
        %s319 = sadd.s32 %s318, %s316
        %s320 = scalar_lea.vmem %s184, %s319
        %v321 = vld [vmem:[%s320] ss:$8 sm:$0x3]
        %s322 = sld [smem:[#allocation4 + $0x5]]
        %s323 = sshra.s32 %s322, 3
        %s324 = sand.u32 %s322, 7
        %s325 = sshra.s32 %s322, 3
        %s326 = sand.u32 %s322, 7
        %s327 = smul.u32 %s323, 2
        %s328 = smul.u32 %s327, 8
        %s329 = sadd.s32 %s328, %s326
        %s330 = scalar_lea.vmem %s184, %s329
        %v331 = vld [vmem:[%s330] ss:$8 sm:$0x3]
        %v332 = vmul.f32 %v321, %v331
        %s333 = sld [smem:[#allocation3 + $0x6]]
        %s334 = sshra.s32 %s333, 3
        %s335 = sand.u32 %s333, 7
        %s336 = sshra.s32 %s333, 3
        %s337 = sand.u32 %s333, 7
        %s338 = smul.u32 %s334, 2
        %s339 = smul.u32 %s338, 8
        %s340 = sadd.s32 %s339, %s337
        %s341 = scalar_lea.vmem %s184, %s340
        %v342 = vld [vmem:[%s341] ss:$8 sm:$0x3]
        %s343 = sld [smem:[#allocation4 + $0x6]]
        %s344 = sshra.s32 %s343, 3
        %s345 = sand.u32 %s343, 7
        %s346 = sshra.s32 %s343, 3
        %s347 = sand.u32 %s343, 7
        %s348 = smul.u32 %s344, 2
        %s349 = smul.u32 %s348, 8
        %s350 = sadd.s32 %s349, %s347
        %s351 = scalar_lea.vmem %s184, %s350
        %v352 = vld [vmem:[%s351] ss:$8 sm:$0x3]
        %v353 = vmul.f32 %v342, %v352
        %s354 = sld [smem:[#allocation3 + $0x7]]
        %s355 = sshra.s32 %s354, 3
        %s356 = sand.u32 %s354, 7
        %s357 = sshra.s32 %s354, 3
        %s358 = sand.u32 %s354, 7
        %s359 = smul.u32 %s355, 2
        %s360 = smul.u32 %s359, 8
        %s361 = sadd.s32 %s360, %s358
        %s362 = scalar_lea.vmem %s184, %s361
        %v363 = vld [vmem:[%s362] ss:$8 sm:$0x3]
        %s364 = sld [smem:[#allocation4 + $0x7]]
        %s365 = sshra.s32 %s364, 3
        %s366 = sand.u32 %s364, 7
        %s367 = sshra.s32 %s364, 3
        %s368 = sand.u32 %s364, 7
        %s369 = smul.u32 %s365, 2
        %s370 = smul.u32 %s369, 8
        %s371 = sadd.s32 %s370, %s368
        %s372 = scalar_lea.vmem %s184, %s371
        %v373 = vld [vmem:[%s372] ss:$8 sm:$0x3]
        %v374 = vmul.f32 %v363, %v373
        %v376 = vperm.slane %v227, 0
        %v377 = vperm.slane %v227, 1
        %v381 = vperm.slane %v248, 0
        %v382 = vperm.slane %v248, 1
        %v386 = vperm.slane %v269, 0
        %v387 = vperm.slane %v269, 1
        %v391 = vperm.slane %v290, 0
        %v392 = vperm.slane %v290, 1
        %v396 = vperm.slane %v311, 0
        %v397 = vperm.slane %v311, 1
        %v401 = vperm.slane %v332, 0
        %v402 = vperm.slane %v332, 1
        %v406 = vperm.slane %v353, 0
        %v407 = vperm.slane %v353, 1
        %v411 = vperm.slane %v374, 0
        %v412 = vperm.slane %v374, 1
        %vm415 = vcmask 1040384
        %v416 = vsel %vm415, %v376, %v381
        %v417 = vsel %vm415, %v377, %v382
        %vm418 = vcmask 1041408
        %v419 = vsel %vm418, %v416, %v386
        %v420 = vsel %vm418, %v417, %v387
        %vm421 = vcmask 1042432
        %v422 = vsel %vm421, %v419, %v391
        %v423 = vsel %vm421, %v420, %v392
        %vm424 = vcmask 1043456
        %v425 = vsel %vm424, %v422, %v396
        %v426 = vsel %vm424, %v423, %v397
        %vm427 = vcmask 1044480
        %v428 = vsel %vm427, %v425, %v401
        %v429 = vsel %vm427, %v426, %v402
        %vm430 = vcmask 1045504
        %v431 = vsel %vm430, %v428, %v406
        %v432 = vsel %vm430, %v429, %v407
        %vm433 = vcmask 1046528
        %v434 = vsel %vm433, %v431, %v411
        %v435 = vsel %vm433, %v432, %v412
        %v436 = vld [vmem:[%s3 + $0x8] sm:$0xff]
        %438 = vset.pattern.permute.xlu0 0
        %439 = vperm.xlu0 %438, %v436
        %v440 = vpop.permute.xlu0 %439
        %v442 = vmul.f32 %v434, %v440
        %v443 = vmul.f32 %v435, %v440
        %v444 = vld [vmem:[%s4 + $0x8] sm:$0xff]
        %446 = vset.pattern.permute.xlu0 0
        %447 = vperm.xlu0 %446, %v444
        %v448 = vpop.permute.xlu0 %447
        %v450 = vadd.f32 %v442, %v448
        %v451 = vadd.f32 %v443, %v448
        %452 = vst [vmem:[%s179 + $0x10] sm:$0xff] %v450
        %453 = vst [vmem:[%s179 + $0x18] sm:$0xff] %v451
        %s454 = sand.u32 %s108, 1
        %s455 = scalar_lea.sflag [#allocation6], %s454
        %s456 = sand.u32 %s108, 1
        %s457 = smul.addr %s456, 32
        %s458 = scalar_lea.vmem [#allocation5], %s457
        // Predicated region
        $region33: #{tpu_custom_call.1} parent=31 // pred_check
          %p459 = pneg %p118
        $region34: #{tpu_custom_call.1} parent=31 // pred_check_branch
          %461 = sbr.rel (%p459) target = $region36
        $region35: #{tpu_custom_call.1} parent=31 // pred_region
          %s462 = smul.u32 2, %s32
          %464 = vsyncadd %s455, 0
          %s465 = smul.addr %s462, 8
          %s466 = scalar_lea.hbm %s5, %s465
          %s467 = sshll.u32 %s458, 4
          %s468 = int_to_ptr.vmem [resolvable:$true] %s467
          %s469 = sshll.u32 %s466, 4
          %s470 = int_to_ptr.hbm [resolvable:$true] %s469
          %475 = dma.vmem_to_hbm [thread:$0]  %s468, 512, %s470, %s455, 256, 512, 16
        $region36: #{tpu_custom_call.1} parent=31 // pred_fallthru
          _
      $region32: #{tpu_custom_call.1} parent=5 // pred_fallthru
        _
      %p476 = scmp.le.s32.totalorder 2, %s27
      // Predicated region
      $region37: #{tpu_custom_call.1} parent=5 // pred_check
        %p477 = pneg %p476
      $region38: #{tpu_custom_call.1} parent=5 // pred_check_branch
        %479 = sbr.rel (%p477) target = $region40
      $region39: #{tpu_custom_call.1} parent=5 // pred_region
        %s480 = ssub.s32 %s27, 2
        // Predicated region
        $region41: #{tpu_custom_call.1} parent=39 // pred_check
          %p481 = pneg %p124
        $region42: #{tpu_custom_call.1} parent=39 // pred_check_branch
          %483 = sbr.rel (%p481) target = $region44
        $region43: #{tpu_custom_call.1} parent=39 // pred_region
          %s484 = sand.u32 %s109, 1
          %s485 = scalar_lea.sflag [#allocation6], %s484
          %s486 = sand.u32 %s109, 1
          %s487 = smul.addr %s486, 32
          %s488 = scalar_lea.vmem [#allocation5], %s487
          %490 = dma.done %s485, 512
        $region44: #{tpu_custom_call.1} parent=39 // pred_fallthru
          _
      $region40: #{tpu_custom_call.1} parent=5 // pred_fallthru
        _
    $region6: #{tpu_custom_call.1} parent=1 // loop_footer
      %s31 = sadd.s32 1, %s27
    $region7: #{tpu_custom_call.1} parent=1 // loop_footer_branch
      %26 = sbr.rel target = $region3
    $region8: #{tpu_custom_call.1} parent=1 // loop_exit
      _
    %491 = vsyncpa [#allocation6], 1
    %s492 = scalar_lea.sflag [#allocation6], 1
    %493 = vsyncpa %s492, 1

</llo_original>
